<compile_context>
chip_gen: v7x
topology: tpu7x:2x2x1
jax: 0.10.0
libtpu: 0.0.40
codegen_flags: <defaults>
</compile_context>

<pallas_src>
import functools

import jax
import jax.numpy as jnp
from jax import lax
from jax.experimental import pallas as pl
from jax.experimental.pallas import tpu as pltpu

_EPS = 1e-5


# --------------------------------------------------------------------------- #
# Kernels
# --------------------------------------------------------------------------- #
def _seg_labels_f32(seg_ref):
    """segmap.squeeze(1).long() semantics for non-negative labels in {0, 1}."""
    s = seg_ref[0]                                       # (1, HW_blk), native dtype
    if jnp.issubdtype(s.dtype, jnp.floating):
        s = jnp.floor(s)                                 # truncate like .long(); VPU filler
    # TODO(synk): >2 segmentation classes would need a real embedding gather; the
    # lerp below matches the 2-row embedding exactly only for labels in {0, 1}.
    return s.astype(jnp.float32)


def edade_fused_kernel(x_ref, seg_ref, gamma_ref, beta_ref, out_ref):
    """Single-pass path: full HW resident per (n, channel-tile)."""
    # x_ref: (1, TC, HW), seg_ref: (1, 1, HW), gamma_ref/beta_ref: (2, TC, 1)
    x = x_ref[0].astype(jnp.float32)                     # (TC, HW) single tile read
    inv_hw = jnp.float32(1.0 / x.shape[-1])

    # Two-pass InstanceNorm stats (biased variance, eps=1e-5) on the resident tile.
    mean = jnp.sum(x, axis=-1, keepdims=True) * inv_hw   # (TC, 1)
    d = x - mean
    var = jnp.sum(d * d, axis=-1, keepdims=True) * inv_hw
    inv_std = lax.rsqrt(var + _EPS)                      # (TC, 1)

    s = _seg_labels_f32(seg_ref)                         # (1, HW)
    g0, g1 = gamma_ref[0], gamma_ref[1]                  # (TC, 1)
    b0, b1 = beta_ref[0], beta_ref[1]

    # out = d * inv_std * (g0 + s*(g1-g0)) + (b0 + s*(b1-b0)); fold per-channel coeffs.
    a0 = g0 * inv_std                                    # (TC, 1)
    a1 = (g1 - g0) * inv_std                             # (TC, 1)
    scale = a0 + s * a1                                  # (TC, HW)
    shift = b0 + s * (b1 - b0)                           # (TC, HW)
    out_ref[0] = (d * scale + shift).astype(out_ref.dtype)


def edade_stats_kernel(x_ref, mean_ref, inv_std_ref, s1_ref, s2_ref, *, hw_total):
    """Large-HW path, pass 1: accumulate per-(n, c) sums over HW chunks."""
    h = pl.program_id(2)

    @pl.when(h == 0)
    def _():
        s1_ref[...] = jnp.zeros_like(s1_ref)
        s2_ref[...] = jnp.zeros_like(s2_ref)

    x = x_ref[0].astype(jnp.float32)                     # (TC, THW)
    s1_ref[...] += jnp.sum(x, axis=-1, keepdims=True)
    s2_ref[...] += jnp.sum(x * x, axis=-1, keepdims=True)

    @pl.when(h == pl.num_programs(2) - 1)
    def _():
        inv_hw = jnp.float32(1.0 / hw_total)
        mean = s1_ref[...] * inv_hw
        # One-pass variance only in the chunked regime (avoids a third sweep over x).
        var = jnp.maximum(s2_ref[...] * inv_hw - mean * mean, 0.0)
        mean_ref[0] = mean
        inv_std_ref[0] = lax.rsqrt(var + _EPS)


def edade_apply_kernel(x_ref, seg_ref, gamma_ref, beta_ref, mean_ref, inv_std_ref,
                       out_ref):
    """Large-HW path, pass 2: normalize + affine on HW chunks."""
    x = x_ref[0].astype(jnp.float32)                     # (TC, THW)
    s = _seg_labels_f32(seg_ref)                         # (1, THW)
    mean = mean_ref[0]                                   # (TC, 1)
    inv_std = inv_std_ref[0]                             # (TC, 1)
    g0, g1 = gamma_ref[0], gamma_ref[1]
    b0, b1 = beta_ref[0], beta_ref[1]

    a0 = g0 * inv_std
    a1 = (g1 - g0) * inv_std
    c0 = b0 - mean * a0
    c1 = (b1 - b0) - mean * a1
    out_ref[0] = (x * (a0 + s * a1) + (c0 + s * c1)).astype(out_ref.dtype)


# --------------------------------------------------------------------------- #
# Tiling / VMEM planning
# --------------------------------------------------------------------------- #
def _vmem_limit_bytes():
    """Generation-dependent scoped-VMEM limit."""
    try:
        info = pltpu.get_tpu_info()
        vmem_phys = int(getattr(info, "vmem_capacity_bytes"))
    except Exception:
        vmem_phys = 64 << 20                 # conservative: assume v7x-class 64 MiB/TC
    if vmem_phys >= (96 << 20):              # v5e / v6e: 128 MiB physical
        return 64 << 20
    return 32 << 20                          # v7x: 64 MiB per TC -> stay tight


def _block_elems_budget(vmem_limit, itemsize):
    # 2x double-buffered input + 2x double-buffered output blocks (native dtype)
    # + ~3 f32 temporaries live in the kernel body (x_f32/d, scale, shift).
    per_elem = 4 * itemsize + 3 * 4
    return int(vmem_limit * 0.75) // per_elem


def _plan_tiling(C, HW, itemsize, vmem_limit):
    """Returns (TC, THW).  THW == HW selects the fused single-pass kernel."""
    budget = _block_elems_budget(vmem_limit, itemsize)
    tcs = [tc for tc in range(8, C + 1, 8) if C % tc == 0] or [C]
    fitting = [tc for tc in tcs if tc * HW <= budget]
    if fitting:
        return max(fitting), HW
    # Large-HW regime: split HW across a grid axis (stats pass + apply pass).
    tc = min(tcs)
    thws = [t for t in range(128, HW, 128) if HW % t == 0 and tc * t <= budget]
    if not thws:
        # TODO(synk): HW with no multiple-of-128 divisor under the budget would need
        # masked partial blocks; fall back to full-HW blocks (may spill on v7x).
        return tc, HW
    return tc, max(thws)


# --------------------------------------------------------------------------- #
# Wrapper
# --------------------------------------------------------------------------- #
def edade(x, segmap, gamma, beta, *, _force_tiling=None):
    """x: (N,C,H,W); segmap: (N,1,H,W) labels in {0,1} (any dtype); gamma/beta: (2,C)."""
    N, C, H, W = x.shape
    HW = H * W
    vmem_limit = _vmem_limit_bytes()
    if _force_tiling is not None:
        TC, THW = _force_tiling
    else:
        TC, THW = _plan_tiling(C, HW, jnp.dtype(x.dtype).itemsize, vmem_limit)

    x2 = x.reshape(N, C, HW)
    seg2 = segmap.reshape(N, 1, HW)                       # native dtype; cast in-kernel
    g3 = gamma.reshape(2, C, 1).astype(jnp.float32)
    b3 = beta.reshape(2, C, 1).astype(jnp.float32)

    if THW == HW:
        # Fused single-pass path.
        # NOTE: channel-tile axis is innermost so the segmap block index is constant
        # across it (no segmap re-DMA per channel tile).  Keep it that way.
        # TODO(synk): on v7x, verify both TensorCores get grid shards; if one is idle,
        # mark the N axis pltpu.CORE_PARALLEL.
        out = pl.pallas_call(
            edade_fused_kernel,
            out_shape=jax.ShapeDtypeStruct((N, C, HW), x.dtype),
            grid=(N, C // TC),
            in_specs=[
                pl.BlockSpec((1, TC, HW), lambda n, c: (n, c, 0)),
                pl.BlockSpec((1, 1, HW), lambda n, c: (n, 0, 0)),
                pl.BlockSpec((2, TC, 1), lambda n, c: (0, c, 0)),
                pl.BlockSpec((2, TC, 1), lambda n, c: (0, c, 0)),
            ],
            out_specs=pl.BlockSpec((1, TC, HW), lambda n, c: (n, c, 0)),
            compiler_params=pltpu.CompilerParams(
                dimension_semantics=("parallel", "parallel"),
                vmem_limit_bytes=vmem_limit,
            ),
        )(x2, seg2, g3, b3)
        return out.reshape(N, C, H, W)

    # -------- Large-HW path: stats pass + apply pass over HW chunks. -------- #
    n_hw = HW // THW

    mean, inv_std = pl.pallas_call(
        functools.partial(edade_stats_kernel, hw_total=HW),
        out_shape=(
            jax.ShapeDtypeStruct((N, C, 1), jnp.float32),
            jax.ShapeDtypeStruct((N, C, 1), jnp.float32),
        ),
        grid=(N, C // TC, n_hw),
        in_specs=[pl.BlockSpec((1, TC, THW), lambda n, c, h: (n, c, h))],
        out_specs=(
            pl.BlockSpec((1, TC, 1), lambda n, c, h: (n, c, 0)),
            pl.BlockSpec((1, TC, 1), lambda n, c, h: (n, c, 0)),
        ),
        scratch_shapes=[
            pltpu.VMEM((TC, 1), jnp.float32),
            pltpu.VMEM((TC, 1), jnp.float32),
        ],
        compiler_params=pltpu.CompilerParams(
            dimension_semantics=("parallel", "parallel", "arbitrary"),
            vmem_limit_bytes=vmem_limit,
        ),
    )(x2)

    out = pl.pallas_call(
        edade_apply_kernel,
        out_shape=jax.ShapeDtypeStruct((N, C, HW), x.dtype),
        grid=(N, C // TC, n_hw),
        in_specs=[
            pl.BlockSpec((1, TC, THW), lambda n, c, h: (n, c, h)),
            pl.BlockSpec((1, 1, THW), lambda n, c, h: (n, 0, h)),
            pl.BlockSpec((2, TC, 1), lambda n, c, h: (0, c, 0)),
            pl.BlockSpec((2, TC, 1), lambda n, c, h: (0, c, 0)),
            pl.BlockSpec((1, TC, 1), lambda n, c, h: (n, c, 0)),
            pl.BlockSpec((1, TC, 1), lambda n, c, h: (n, c, 0)),
        ],
        out_specs=pl.BlockSpec((1, TC, THW), lambda n, c, h: (n, c, h)),
        compiler_params=pltpu.CompilerParams(
            dimension_semantics=("parallel", "parallel", "parallel"),
            vmem_limit_bytes=vmem_limit,
        ),
    )(x2, seg2, g3, b3, mean, inv_std)
    return out.reshape(N, C, H, W)


# --------------------------------------------------------------------------- #
# Pure-JAX reference and self-test
# --------------------------------------------------------------------------- #
def edade_ref(x, segmap, gamma, beta, eps=_EPS):
    """Pure-JAX reference mirroring the PyTorch forward."""
    mean = x.mean(axis=(2, 3), keepdims=True)
    var = x.var(axis=(2, 3), keepdims=True)              # biased, as in InstanceNorm2d
    normalized = (x - mean) / jnp.sqrt(var + eps)
    mask = segmap[:, 0].astype(jnp.int32)                # (N, H, W)
    g = jnp.transpose(gamma[mask], (0, 3, 1, 2))         # (N, C, H, W)
    b = jnp.transpose(beta[mask], (0, 3, 1, 2))
    return normalized * g + b


if __name__ == "__main__":
    key = jax.random.PRNGKey(0)

    # ---- Test 1: fused single-pass path (module-consistent small shapes). ----
    N, C, H, W = 2, 4, 16, 16
    kx, kseg, kg, kb, k2 = jax.random.split(key, 5)
    x = jax.random.normal(kx, (N, C, H, W), dtype=jnp.float32)
    segmap = jax.random.bernoulli(kseg, 0.5, (N, 1, H, W)).astype(jnp.float32)
    gamma = 1.0 + 0.1 * jax.random.normal(kg, (2, C), dtype=jnp.float32)
    beta = 0.1 * jax.random.normal(kb, (2, C), dtype=jnp.float32)

    out = jax.block_until_ready(edade(x, segmap, gamma, beta))
    ref = edade_ref(x, segmap, gamma, beta)
    assert out.shape == (N, C, H, W)
    assert jnp.allclose(out, ref, rtol=1e-4, atol=1e-4), "fused path mismatch vs reference"

    # ---- Test 2: large-HW chunked path (forced tiling at a small shape). ----
    N2, C2, H2, W2 = 1, 8, 16, 32
    kx2, kseg2, kg2, kb2 = jax.random.split(k2, 4)
    x2 = jax.random.normal(kx2, (N2, C2, H2, W2), dtype=jnp.float32)
    segmap2 = jax.random.bernoulli(kseg2, 0.5, (N2, 1, H2, W2)).astype(jnp.float32)
    gamma2 = 1.0 + 0.1 * jax.random.normal(kg2, (2, C2), dtype=jnp.float32)
    beta2 = 0.1 * jax.random.normal(kb2, (2, C2), dtype=jnp.float32)

    out2 = jax.block_until_ready(edade(x2, segmap2, gamma2, beta2, _force_tiling=(8, 128)))
    ref2 = edade_ref(x2, segmap2, gamma2, beta2)
    assert out2.shape == (N2, C2, H2, W2)
    assert jnp.allclose(out2, ref2, rtol=1e-4, atol=1e-4), "chunked path mismatch vs reference"

    print("KERNEL_OK")
</pallas_src>

<mosaic_0001>
module attributes {stable_mosaic.version = 11 : i64} {
  func.func @edade_fused_kernel(%arg0: i32, %arg1: i32, %arg2: memref<1x4x256xf32, #tpu.memory_space<vmem>>, %arg3: memref<1x1x256xf32, #tpu.memory_space<vmem>>, %arg4: memref<2x4x1xf32, #tpu.memory_space<vmem>>, %arg5: memref<2x4x1xf32, #tpu.memory_space<vmem>>, %arg6: memref<1x4x256xf32, #tpu.memory_space<vmem>>) attributes {dimension_semantics = [#tpu.dimension_semantics<parallel>, #tpu.dimension_semantics<parallel>], iteration_bounds = array<i64: 2, 1>, scalar_prefetch = 0 : i64, scratch_operands = 0 : i64, tpu.core_type = #tpu.core_type<tc>, window_params = [{transform_indices = @transform_0, window_bounds = array<i64: 1, 4, 256>}, {transform_indices = @transform_1, window_bounds = array<i64: 1, 1, 256>}, {transform_indices = @transform_2, window_bounds = array<i64: 2, 4, 1>}, {transform_indices = @transform_3, window_bounds = array<i64: 2, 4, 1>}, {transform_indices = @transform_4, window_bounds = array<i64: 1, 4, 256>}]} {
    %c0 = arith.constant 0 : index
    %c0_0 = arith.constant 0 : index
    %c0_1 = arith.constant 0 : index
    %0 = vector.load %arg2[%c0, %c0_0, %c0_1] : memref<1x4x256xf32, #tpu.memory_space<vmem>>, vector<1x4x256xf32>
    %1 = vector.shape_cast %0 : vector<1x4x256xf32> to vector<4x256xf32>
    %cst = arith.constant dense<0.000000e+00> : vector<4xf32>
    %2 = vector.multi_reduction <add>, %1, %cst [1] : vector<4x256xf32> to vector<4xf32>
    %3 = vector.shape_cast %2 : vector<4xf32> to vector<4x1xf32>
    %cst_2 = arith.constant 3.906250e-03 : f32
    %4 = vector.broadcast %cst_2 : f32 to vector<4x1xf32>
    %5 = arith.mulf %3, %4 : vector<4x1xf32>
    %6 = vector.broadcast %5 : vector<4x1xf32> to vector<4x256xf32>
    %7 = arith.subf %1, %6 : vector<4x256xf32>
    %8 = arith.mulf %7, %7 : vector<4x256xf32>
    %cst_3 = arith.constant dense<0.000000e+00> : vector<4xf32>
    %9 = vector.multi_reduction <add>, %8, %cst_3 [1] : vector<4x256xf32> to vector<4xf32>
    %10 = vector.shape_cast %9 : vector<4xf32> to vector<4x1xf32>
    %cst_4 = arith.constant 3.906250e-03 : f32
    %11 = vector.broadcast %cst_4 : f32 to vector<4x1xf32>
    %12 = arith.mulf %10, %11 : vector<4x1xf32>
    %cst_5 = arith.constant 9.99999974E-6 : f32
    %13 = vector.broadcast %cst_5 : f32 to vector<4x1xf32>
    %14 = arith.addf %12, %13 : vector<4x1xf32>
    %15 = math.rsqrt %14 : vector<4x1xf32>
    %c0_6 = arith.constant 0 : index
    %c0_7 = arith.constant 0 : index
    %c0_8 = arith.constant 0 : index
    %16 = vector.load %arg3[%c0_6, %c0_7, %c0_8] : memref<1x1x256xf32, #tpu.memory_space<vmem>>, vector<1x1x256xf32>
    %17 = vector.shape_cast %16 : vector<1x1x256xf32> to vector<1x256xf32>
    %18 = math.floor %17 : vector<1x256xf32>
    %c0_9 = arith.constant 0 : index
    %c0_10 = arith.constant 0 : index
    %c0_11 = arith.constant 0 : index
    %19 = vector.load %arg4[%c0_9, %c0_10, %c0_11] : memref<2x4x1xf32, #tpu.memory_space<vmem>>, vector<1x4x1xf32>
    %20 = vector.shape_cast %19 : vector<1x4x1xf32> to vector<4x1xf32>
    %c1 = arith.constant 1 : index
    %c0_12 = arith.constant 0 : index
    %c0_13 = arith.constant 0 : index
    %21 = vector.load %arg4[%c1, %c0_12, %c0_13] : memref<2x4x1xf32, #tpu.memory_space<vmem>>, vector<1x4x1xf32>
    %22 = vector.shape_cast %21 : vector<1x4x1xf32> to vector<4x1xf32>
    %c0_14 = arith.constant 0 : index
    %c0_15 = arith.constant 0 : index
    %c0_16 = arith.constant 0 : index
    %23 = vector.load %arg5[%c0_14, %c0_15, %c0_16] : memref<2x4x1xf32, #tpu.memory_space<vmem>>, vector<1x4x1xf32>
    %24 = vector.shape_cast %23 : vector<1x4x1xf32> to vector<4x1xf32>
    %c1_17 = arith.constant 1 : index
    %c0_18 = arith.constant 0 : index
    %c0_19 = arith.constant 0 : index
    %25 = vector.load %arg5[%c1_17, %c0_18, %c0_19] : memref<2x4x1xf32, #tpu.memory_space<vmem>>, vector<1x4x1xf32>
    %26 = vector.shape_cast %25 : vector<1x4x1xf32> to vector<4x1xf32>
    %27 = arith.mulf %20, %15 : vector<4x1xf32>
    %28 = arith.subf %22, %20 : vector<4x1xf32>
    %29 = arith.mulf %28, %15 : vector<4x1xf32>
    %30 = vector.broadcast %18 : vector<1x256xf32> to vector<4x256xf32>
    %31 = vector.broadcast %29 : vector<4x1xf32> to vector<4x256xf32>
    %32 = arith.mulf %30, %31 : vector<4x256xf32>
    %33 = vector.broadcast %27 : vector<4x1xf32> to vector<4x256xf32>
    %34 = arith.addf %33, %32 : vector<4x256xf32>
    %35 = arith.subf %26, %24 : vector<4x1xf32>
    %36 = vector.broadcast %18 : vector<1x256xf32> to vector<4x256xf32>
    %37 = vector.broadcast %35 : vector<4x1xf32> to vector<4x256xf32>
    %38 = arith.mulf %36, %37 : vector<4x256xf32>
    %39 = vector.broadcast %24 : vector<4x1xf32> to vector<4x256xf32>
    %40 = arith.addf %39, %38 : vector<4x256xf32>
    %41 = arith.mulf %7, %34 : vector<4x256xf32>
    %42 = arith.addf %41, %40 : vector<4x256xf32>
    %c0_20 = arith.constant 0 : index
    %c0_21 = arith.constant 0 : index
    %c0_22 = arith.constant 0 : index
    %43 = vector.load %arg6[%c0_20, %c0_21, %c0_22] : memref<1x4x256xf32, #tpu.memory_space<vmem>>, vector<1x4x256xf32>
    %44 = vector.shape_cast %43 : vector<1x4x256xf32> to vector<4x256xf32>
    %45 = vector.shape_cast %42 : vector<4x256xf32> to vector<1x4x256xf32>
    tpu.vector_store %arg6[%c0_20, %c0_21, %c0_22], %45 {strides = array<i32>} : memref<1x4x256xf32, #tpu.memory_space<vmem>>, vector<1x4x256xf32>,
    return
  }
  func.func @transform_0(%arg0: i32, %arg1: i32) -> (i32, i32, i32) {
    %c0_i32 = arith.constant 0 : i32
    %c0_i32_0 = arith.constant 0 : i32
    return %arg0, %arg1, %c0_i32 : i32, i32, i32
  }
  func.func @transform_1(%arg0: i32, %arg1: i32) -> (i32, i32, i32) {
    %c0_i32 = arith.constant 0 : i32
    %c0_i32_0 = arith.constant 0 : i32
    %c0_i32_1 = arith.constant 0 : i32
    return %arg0, %c0_i32, %c0_i32_0 : i32, i32, i32
  }
  func.func @transform_2(%arg0: i32, %arg1: i32) -> (i32, i32, i32) {
    %c0_i32 = arith.constant 0 : i32
    %c0_i32_0 = arith.constant 0 : i32
    %c0_i32_1 = arith.constant 0 : i32
    return %c0_i32, %arg1, %c0_i32_0 : i32, i32, i32
  }
  func.func @transform_3(%arg0: i32, %arg1: i32) -> (i32, i32, i32) {
    %c0_i32 = arith.constant 0 : i32
    %c0_i32_0 = arith.constant 0 : i32
    %c0_i32_1 = arith.constant 0 : i32
    return %c0_i32, %arg1, %c0_i32_0 : i32, i32, i32
  }
  func.func @transform_4(%arg0: i32, %arg1: i32) -> (i32, i32, i32) {
    %c0_i32 = arith.constant 0 : i32
    %c0_i32_0 = arith.constant 0 : i32
    return %arg0, %arg1, %c0_i32 : i32, i32, i32
  }
}

</mosaic_0001>

<llo_original>
// kernel: tpu_custom_call.1
$region0: #{tpu_custom_call.1}
  #allocation0 [shape = 'u32[]', space=smem, size = 0x4, offset = 0x4, fixed_abs, tag = 'smem constant byte address 0x4 - core index']
  #allocation1 [shape = 'u32[144,128]{1,0:T(1,128)}', space=vmem, size = 0x12000, scoped, tag = 'internal scratch']
  %s0 = inlined_call_operand.vmem [shape: f32[2,4,256], index: 0, kind: input, shape index: {}]
  %s1 = inlined_call_operand.vmem [shape: f32[2,1,256], index: 1, kind: input, shape index: {}]
  %s2 = inlined_call_operand.vmem [shape: f32[2,4,1], index: 2, kind: input, shape index: {}]
  %s3 = inlined_call_operand.vmem [shape: f32[2,4,1], index: 3, kind: input, shape index: {}]
  %s4 = inlined_call_operand.hbm [shape: f32[2,4,256], index: 4, kind: output, shape index: {}]
  %s5 = sld [smem:[#allocation0]]
  $region49: #{tpu_custom_call.1} parent=0
    _
  %s7 = ssub.s32 1, %s5
  %s8 = scalar_select 0, %s7, %s5
  $region1: #{tpu_custom_call.1} parent=0
    #allocation2 [shape = 'u8[8192]{0}', space=vmem, size = 0x2000, scoped, tag = 'output window, operand 0']
    #allocation3 [shape = 's32[2]{0}', space=sflag, size = 0x8, scoped, tag = 'scoped memory for tpu_custom_call.1']
    %9 = vsyncpa [#allocation3], 0
    %s10 = scalar_lea.sflag [#allocation3], 1
    %11 = vsyncpa %s10, 0
    loop: start=0, step=1, limit=4
    $region2: #{tpu_custom_call.1} parent=1 // loop_pre_header
      _
    $region3: #{tpu_custom_call.1} parent=1 // loop_header
      %s13 = sphi 0, %s17
      %p14 = scmp.ge.s32.totalorder %s13, 4
      %s20 = sphi 0, %s32
      %s21 = sphi 0, %s28
      %s22 = sphi 0, %s20
      %s23 = sphi 0, %s21
      %s24 = sphi 0, %s22
      %s25 = sphi 0, %s23
      %s37 = sphi 0, %s39
      %s40 = sphi 0, %s37
      %s41 = sphi 0, %s40
      %s57 = sphi 0, %s41
      %s63 = sphi 0, %s65
      %s66 = sphi 0, %s63
      %s67 = sphi 0, %s66
      %s83 = sphi 0, %s67
      %s89 = sphi 0, %s91
      %s92 = sphi 0, %s89
      %s93 = sphi 0, %s92
      %s109 = sphi 0, %s93
      %s115 = sphi 0, %s117
      %s118 = sphi 0, %s115
      %s119 = sphi 0, %s118
      %s135 = sphi 0, %s119
      %s143 = sphi 0, %s145
      %s146 = sphi 0, %s143
      %s147 = sphi 0, %s146
      %s163 = sphi 0, %s147
    $region4: #{tpu_custom_call.1} parent=1 // loop_header_branch
      %16 = sbr.rel (%p14) target = $region8
    $region5: #{tpu_custom_call.1} parent=1 // loop_body
      %s18 = ssub.s32 %s13, 1
      %s19 = ssub.s32 %s13, 2
      %s26 = sadd.s32 1, %s21
      %p27 = scmp.ge.s32.totalorder %s26, 1
      %s28 = scalar_select %p27, 0, %s26
      %s29 = sadd.s32 1, %s20
      %s30 = scalar_select %p27, %s29, %s20
      %p31 = scmp.ge.s32.totalorder %s30, 2
      %s32 = scalar_select %p31, 0, %s30
      %s33 = ssub.s32 %s20, %s32
      %s34 = ssub.s32 %s21, %s28
      %s35 = sor.u32 %s33, %s34
      %p36 = scmp.eq.s32.totalorder %s35, 0
      %s38 = sadd.s32 %s37, 1
      %s39 = scalar_select %p36, %s37, %s38
      %p42 = pneg %p36
      %p43 = scmp.eq.s32.totalorder %s13, 1
      %p44 = por %p42, %p43
      %p45 = scmp.ne.s32.totalorder %s37, %s40
      %p46 = scmp.eq.s32.totalorder %s13, 0
      %p47 = por %p45, %p46
      %p48 = scmp.ne.s32.totalorder %s37, %s40
      %p49 = scmp.eq.s32.totalorder %s18, 1
      %p50 = por %p48, %p49
      %p51 = scmp.ne.s32.totalorder %s40, %s41
      %p52 = scmp.eq.s32.totalorder %s18, 0
      %p53 = por %p51, %p52
      %p54 = scmp.ne.s32.totalorder %s40, %s41
      %p55 = scmp.eq.s32.totalorder %s19, 1
      %p56 = por %p54, %p55
      %p58 = scmp.ne.s32.totalorder %s41, %s57
      %p59 = scmp.eq.s32.totalorder %s19, 0
      %p60 = por %p58, %p59
      %s61 = ssub.s32 %s20, %s32
      %p62 = scmp.eq.s32.totalorder %s61, 0
      %s64 = sadd.s32 %s63, 1
      %s65 = scalar_select %p62, %s63, %s64
      %p68 = pneg %p62
      %p69 = scmp.eq.s32.totalorder %s13, 1
      %p70 = por %p68, %p69
      %p71 = scmp.ne.s32.totalorder %s63, %s66
      %p72 = scmp.eq.s32.totalorder %s13, 0
      %p73 = por %p71, %p72
      %p74 = scmp.ne.s32.totalorder %s63, %s66
      %p75 = scmp.eq.s32.totalorder %s18, 1
      %p76 = por %p74, %p75
      %p77 = scmp.ne.s32.totalorder %s66, %s67
      %p78 = scmp.eq.s32.totalorder %s18, 0
      %p79 = por %p77, %p78
      %p80 = scmp.ne.s32.totalorder %s66, %s67
      %p81 = scmp.eq.s32.totalorder %s19, 1
      %p82 = por %p80, %p81
      %p84 = scmp.ne.s32.totalorder %s67, %s83
      %p85 = scmp.eq.s32.totalorder %s19, 0
      %p86 = por %p84, %p85
      %s87 = ssub.s32 %s21, %s28
      %p88 = scmp.eq.s32.totalorder %s87, 0
      %s90 = sadd.s32 %s89, 1
      %s91 = scalar_select %p88, %s89, %s90
      %p94 = pneg %p88
      %p95 = scmp.eq.s32.totalorder %s13, 1
      %p96 = por %p94, %p95
      %p97 = scmp.ne.s32.totalorder %s89, %s92
      %p98 = scmp.eq.s32.totalorder %s13, 0
      %p99 = por %p97, %p98
      %p100 = scmp.ne.s32.totalorder %s89, %s92
      %p101 = scmp.eq.s32.totalorder %s18, 1
      %p102 = por %p100, %p101
      %p103 = scmp.ne.s32.totalorder %s92, %s93
      %p104 = scmp.eq.s32.totalorder %s18, 0
      %p105 = por %p103, %p104
      %p106 = scmp.ne.s32.totalorder %s92, %s93
      %p107 = scmp.eq.s32.totalorder %s19, 1
      %p108 = por %p106, %p107
      %p110 = scmp.ne.s32.totalorder %s93, %s109
      %p111 = scmp.eq.s32.totalorder %s19, 0
      %p112 = por %p110, %p111
      %s113 = ssub.s32 %s21, %s28
      %p114 = scmp.eq.s32.totalorder %s113, 0
      %s116 = sadd.s32 %s115, 1
      %s117 = scalar_select %p114, %s115, %s116
      %p120 = pneg %p114
      %p121 = scmp.eq.s32.totalorder %s13, 1
      %p122 = por %p120, %p121
      %p123 = scmp.ne.s32.totalorder %s115, %s118
      %p124 = scmp.eq.s32.totalorder %s13, 0
      %p125 = por %p123, %p124
      %p126 = scmp.ne.s32.totalorder %s115, %s118
      %p127 = scmp.eq.s32.totalorder %s18, 1
      %p128 = por %p126, %p127
      %p129 = scmp.ne.s32.totalorder %s118, %s119
      %p130 = scmp.eq.s32.totalorder %s18, 0
      %p131 = por %p129, %p130
      %p132 = scmp.ne.s32.totalorder %s118, %s119
      %p133 = scmp.eq.s32.totalorder %s19, 1
      %p134 = por %p132, %p133
      %p136 = scmp.ne.s32.totalorder %s119, %s135
      %p137 = scmp.eq.s32.totalorder %s19, 0
      %p138 = por %p136, %p137
      %s139 = ssub.s32 %s20, %s32
      %s140 = ssub.s32 %s21, %s28
      %s141 = sor.u32 %s139, %s140
      %p142 = scmp.eq.s32.totalorder %s141, 0
      %s144 = sadd.s32 %s143, 1
      %s145 = scalar_select %p142, %s143, %s144
      %p148 = pneg %p142
      %p149 = scmp.eq.s32.totalorder %s13, 1
      %p150 = por %p148, %p149
      %p151 = scmp.ne.s32.totalorder %s143, %s146
      %p152 = scmp.eq.s32.totalorder %s13, 0
      %p153 = por %p151, %p152
      %p154 = scmp.ne.s32.totalorder %s143, %s146
      %p155 = scmp.eq.s32.totalorder %s18, 1
      %p156 = por %p154, %p155
      %p157 = scmp.ne.s32.totalorder %s146, %s147
      %p158 = scmp.eq.s32.totalorder %s18, 0
      %p159 = por %p157, %p158
      %p160 = scmp.ne.s32.totalorder %s146, %s147
      %p161 = scmp.eq.s32.totalorder %s19, 1
      %p162 = por %p160, %p161
      %p164 = scmp.ne.s32.totalorder %s147, %s163
      %p165 = scmp.eq.s32.totalorder %s19, 0
      %p166 = por %p164, %p165
      %p167 = scmp.le.s32.totalorder 1, %s13
      %p168 = scmp.lt.s32.totalorder %s13, 3
      %p169 = pnand %p167, %p168
      %p170 = pneg %p169
      // Predicated region
      $region9: #{tpu_custom_call.1} parent=5 // pred_check
        _
      $region10: #{tpu_custom_call.1} parent=5 // pred_check_branch
        %172 = sbr.rel (%p169) target = $region12
      $region11: #{tpu_custom_call.1} parent=5 // pred_region
        %s173 = ssub.s32 %s13, 1
        // Predicated region
        $region13: #{tpu_custom_call.1} parent=11 // pred_check
          %p174 = pneg %p105
        $region14: #{tpu_custom_call.1} parent=11 // pred_check_branch
          %176 = sbr.rel (%p174) target = $region16
        $region15: #{tpu_custom_call.1} parent=11 // pred_region
          %p177 = scmp.lt.s32.totalorder %s23, 0
          %s178 = scalar_select %p177, %s23, 0
          %s179 = smul.addr %s178, 4
          %s180 = scalar_lea.vmem %s2, %s179
        $region16: #{tpu_custom_call.1} parent=11 // pred_fallthru
          _
        // Predicated region
        $region17: #{tpu_custom_call.1} parent=11 // pred_check
          %p181 = pneg %p131
        $region18: #{tpu_custom_call.1} parent=11 // pred_check_branch
          %183 = sbr.rel (%p181) target = $region20
        $region19: #{tpu_custom_call.1} parent=11 // pred_region
          %p184 = scmp.lt.s32.totalorder %s23, 0
          %s185 = scalar_select %p184, %s23, 0
          %s186 = smul.addr %s185, 4
          %s187 = scalar_lea.vmem %s3, %s186
        $region20: #{tpu_custom_call.1} parent=11 // pred_fallthru
          _
      $region12: #{tpu_custom_call.1} parent=5 // pred_fallthru
        _
      %p188 = scmp.lt.s32.totalorder %s13, 2
      // Predicated region
      $region21: #{tpu_custom_call.1} parent=5 // pred_check
        %p189 = pneg %p188
      $region22: #{tpu_custom_call.1} parent=5 // pred_check_branch
        %191 = sbr.rel (%p189) target = $region24
      $region23: #{tpu_custom_call.1} parent=5 // pred_region
        // Predicated region
        $region25: #{tpu_custom_call.1} parent=23 // pred_check
          %p192 = pneg %p47
        $region26: #{tpu_custom_call.1} parent=23 // pred_check_branch
          %194 = sbr.rel (%p192) target = $region28
        $region27: #{tpu_custom_call.1} parent=23 // pred_region
          %p195 = scmp.lt.s32.totalorder %s20, 1
          %s196 = scalar_select %p195, %s20, 1
          %p197 = scmp.lt.s32.totalorder %s21, 0
          %s198 = scalar_select %p197, %s21, 0
          %s199 = smul.addr %s198, 2
          %s200 = smul.addr %s196, 2
          %s201 = sadd.s32 %s199, %s200
          %s202 = smul.addr %s201, 4
          %s203 = scalar_lea.vmem %s0, %s202
        $region28: #{tpu_custom_call.1} parent=23 // pred_fallthru
          _
        // Predicated region
        $region29: #{tpu_custom_call.1} parent=23 // pred_check
          %p204 = pneg %p73
        $region30: #{tpu_custom_call.1} parent=23 // pred_check_branch
          %206 = sbr.rel (%p204) target = $region32
        $region31: #{tpu_custom_call.1} parent=23 // pred_region
          %p207 = scmp.lt.s32.totalorder %s20, 1
          %s208 = scalar_select %p207, %s20, 1
          %s209 = smul.addr %s208, 2
          %s210 = scalar_lea.vmem %s1, %s209
        $region32: #{tpu_custom_call.1} parent=23 // pred_fallthru
          _
      $region24: #{tpu_custom_call.1} parent=5 // pred_fallthru
        _
      %p211 = scmp.le.s32.totalorder 1, %s13
      %p212 = scmp.lt.s32.totalorder %s13, 3
      %p213 = pnand %p211, %p212
      %p214 = pneg %p213
      // Predicated region
      $region33: #{tpu_custom_call.1} parent=5 // pred_check
        _
      $region34: #{tpu_custom_call.1} parent=5 // pred_check_branch
        %216 = sbr.rel (%p213) target = $region36
      $region35: #{tpu_custom_call.1} parent=5 // pred_region
        %s217 = ssub.s32 %s13, 1
        %p218 = scmp.lt.s32.totalorder %s22, 1
        %s219 = scalar_select %p218, %s22, 1
        %p220 = scmp.lt.s32.totalorder %s23, 0
        %s221 = scalar_select %p220, %s23, 0
        %s222 = smul.addr %s221, 2
        %s223 = smul.addr %s219, 2
        %s224 = sadd.s32 %s222, %s223
        %s225 = smul.addr %s224, 4
        %s226 = scalar_lea.vmem %s0, %s225
        %p227 = pneg %p53
        %p228 = pneg %p50
        %p229 = scmp.lt.s32.totalorder %s22, 1
        %s230 = scalar_select %p229, %s22, 1
        %s231 = smul.addr %s230, 2
        %s232 = scalar_lea.vmem %s1, %s231
        %p233 = pneg %p79
        %p234 = pneg %p76
        %p235 = scmp.lt.s32.totalorder %s23, 0
        %s236 = scalar_select %p235, %s23, 0
        %s237 = smul.addr %s236, 4
        %s238 = scalar_lea.vmem %s2, %s237
        %p239 = pneg %p105
        %p240 = pneg %p102
        %p241 = scmp.lt.s32.totalorder %s23, 0
        %s242 = scalar_select %p241, %s23, 0
        %s243 = smul.addr %s242, 4
        %s244 = scalar_lea.vmem %s3, %s243
        %p245 = pneg %p131
        %p246 = pneg %p128
        %p247 = pneg %p159
        %p248 = pneg %p156
        %s249 = sand.u32 %s146, 1
        %s250 = scalar_lea.sflag [#allocation3], %s249
        %s251 = sand.u32 %s146, 1
        %s252 = smul.addr %s251, 8
        %s253 = scalar_lea.vmem [#allocation2], %s252
        %p254 = scmp.lt.s32.totalorder %s22, 1
        %s255 = scalar_select %p254, %s22, 1
        %p256 = scmp.lt.s32.totalorder %s23, 0
        %s257 = scalar_select %p256, %s23, 0
        %s258 = smul.addr %s257, 2
        %s259 = smul.addr %s255, 2
        %s260 = sadd.s32 %s258, %s259
        %s261 = smul.addr %s260, 4
        %s262 = scalar_lea.vmem %s0, %s261
        %p263 = scmp.lt.s32.totalorder %s22, 1
        %s264 = scalar_select %p263, %s22, 1
        %s265 = smul.addr %s264, 2
        %s266 = scalar_lea.vmem %s1, %s265
        %p267 = scmp.lt.s32.totalorder %s23, 0
        %s268 = scalar_select %p267, %s23, 0
        %s269 = smul.addr %s268, 4
        %s270 = scalar_lea.vmem %s2, %s269
        %p271 = scmp.lt.s32.totalorder %s23, 0
        %s272 = scalar_select %p271, %s23, 0
        %s273 = smul.addr %s272, 4
        %s274 = scalar_lea.vmem %s3, %s273
        %v275 = vld [vmem:[%s262] sm:$0xff]
        %v277 = vcombine.high %v275, %v275
        %vm279 = vcmask 1043456
        %v280 = vsel %vm279, %v275, 0.0
        %v281 = vsel %vm279, %v277, 0.0
        %v282 = vadd.f32 %v280, %v281
        %283 = vadd.xlane.f32.xlu0 %v282
        %v284 = vpop.xlane.xlu0 %283
        %v285 = vmul.f32 %v284, 0.00390625
        %v288 = vunpack.c.l.s4 839922192
        %v289 = vunpack.c.0.s8 %v288
        %v290 = vlaneseq
        %v291 = vshrl.u32 %v290, 7
        %v292 = vsub.s32 %v289, %v291
        %v293 = vrot.slane %v285, %v292
        %v295 = vsub.f32 %v275, %v293
        %v296 = vmul.f32 %v295, %v295
        %v298 = vcombine.high %v296, %v296
        %v300 = vsel %vm279, %v296, 0.0
        %v301 = vsel %vm279, %v298, 0.0
        %v302 = vadd.f32 %v300, %v301
        %303 = vadd.xlane.f32.xlu0 %v302
        %v304 = vpop.xlane.xlu0 %303
        %v305 = vmul.f32 %v304, 0.00390625
        %v306 = vadd.f32 %v305, 1e-05
        %v307 = vrsqrt.pop %v306
        %v308 = vld [vmem:[%s266] sm:$0x3]
        %v309 = vfloor.f32 %v308
        %v310 = vld [vmem:[%s270] sm:$0xf]
        %s311 = scalar_lea.vmem %s270, 4
        %v312 = vld [vmem:[%s311] sm:$0xf]
        %v313 = vld [vmem:[%s274] sm:$0xf]
        %s314 = scalar_lea.vmem %s274, 4
        %v315 = vld [vmem:[%s314] sm:$0xf]
        %v316 = vmul.f32 %v310, %v307
        %v317 = vsub.f32 %v312, %v310
        %v318 = vmul.f32 %v317, %v307
        %v320 = vlaneseq
        %v321 = vshrl.u32 %v320, 7
        %v322 = vsub.s32 0, %v321
        %v323 = vrot.slane %v309, %v322
        %v324 = vlaneseq
        %v325 = vshrl.u32 %v324, 7
        %v326 = vsub.s32 1, %v325
        %v327 = vrot.slane %v309, %v326
        %331 = vset.pattern.permute.xlu0 0
        %332 = vperm.xlu0 %331, %v318
        %v333 = vpop.permute.xlu0 %332
        %v335 = vmul.f32 %v323, %v333
        %v336 = vmul.f32 %v327, %v333
        %338 = vset.pattern.permute.xlu0 0
        %339 = vperm.xlu0 %338, %v316
        %v340 = vpop.permute.xlu0 %339
        %v342 = vadd.f32 %v340, %v335
        %v343 = vadd.f32 %v340, %v336
        %v344 = vsub.f32 %v315, %v313
        %346 = vset.pattern.permute.xlu0 0
        %347 = vperm.xlu0 %346, %v344
        %v348 = vpop.permute.xlu0 %347
        %v350 = vmul.f32 %v323, %v348
        %v351 = vmul.f32 %v327, %v348
        %353 = vset.pattern.permute.xlu0 0
        %354 = vperm.xlu0 %353, %v313
        %v355 = vpop.permute.xlu0 %354
        %v357 = vadd.f32 %v355, %v350
        %v358 = vadd.f32 %v355, %v351
        %v361 = vcombine.low %v342, %v343
        %v363 = vmul.f32 %v295, %v361
        %v366 = vcombine.low %v357, %v358
        %v368 = vadd.f32 %v363, %v366
        %369 = vst [vmem:[%s253] sm:$0xff] %v368
        %s370 = sand.u32 %s146, 1
        %s371 = scalar_lea.sflag [#allocation3], %s370
        %s372 = sand.u32 %s146, 1
        %s373 = smul.addr %s372, 8
        %s374 = scalar_lea.vmem [#allocation2], %s373
        // Predicated region
        $region37: #{tpu_custom_call.1} parent=35 // pred_check
          %p375 = pneg %p156
        $region38: #{tpu_custom_call.1} parent=35 // pred_check_branch
          %377 = sbr.rel (%p375) target = $region40
        $region39: #{tpu_custom_call.1} parent=35 // pred_region
          %s379 = ssub.s32 128, 128
          %380 = vsyncadd %s371, %s379
          %s381 = smul.addr %s23, 2
          %s382 = smul.addr %s22, 2
          %s383 = sadd.s32 %s381, %s382
          %s384 = smul.addr %s383, 64
          %s385 = scalar_lea.hbm %s4, %s384
          %s387 = sshll.u32 %s374, 4
          %s388 = int_to_ptr.vmem [resolvable:$true] %s387
          %390 = dma.vmem_to_hbm [thread:$0]  %s388, 128, %s385, %s371
        $region40: #{tpu_custom_call.1} parent=35 // pred_fallthru
          _
      $region36: #{tpu_custom_call.1} parent=5 // pred_fallthru
        _
      %p391 = scmp.le.s32.totalorder 2, %s13
      // Predicated region
      $region41: #{tpu_custom_call.1} parent=5 // pred_check
        %p392 = pneg %p391
      $region42: #{tpu_custom_call.1} parent=5 // pred_check_branch
        %394 = sbr.rel (%p392) target = $region44
      $region43: #{tpu_custom_call.1} parent=5 // pred_region
        %s395 = ssub.s32 %s13, 2
        // Predicated region
        $region45: #{tpu_custom_call.1} parent=43 // pred_check
          %p396 = pneg %p162
        $region46: #{tpu_custom_call.1} parent=43 // pred_check_branch
          %398 = sbr.rel (%p396) target = $region48
        $region47: #{tpu_custom_call.1} parent=43 // pred_region
          %s399 = sand.u32 %s147, 1
          %s400 = scalar_lea.sflag [#allocation3], %s399
          %s401 = sand.u32 %s147, 1
          %s402 = smul.addr %s401, 8
          %s403 = scalar_lea.vmem [#allocation2], %s402
          %404 = dma.done %s400, 128
        $region48: #{tpu_custom_call.1} parent=43 // pred_fallthru
          _
      $region44: #{tpu_custom_call.1} parent=5 // pred_fallthru
        _
    $region6: #{tpu_custom_call.1} parent=1 // loop_footer
      %s17 = sadd.s32 1, %s13
    $region7: #{tpu_custom_call.1} parent=1 // loop_footer_branch
      %12 = sbr.rel target = $region3
    $region8: #{tpu_custom_call.1} parent=1 // loop_exit
      _
    %405 = vsyncpa [#allocation3], 1
    %s406 = scalar_lea.sflag [#allocation3], 1
    %407 = vsyncpa %s406, 1

</llo_original>
